<compile_context>
chip_gen: v7x
topology: tpu7x:2x2x1
jax: 0.10.0
libtpu: 0.0.40
codegen_flags: <defaults>
</compile_context>

<pallas_src>
import functools

import jax
import jax.numpy as jnp
from jax.experimental import pallas as pl
from jax.experimental.pallas import tpu as pltpu


def _log_sigmoid(x):
    # numerically stable log(sigmoid(x)) = min(x, 0) - log1p(exp(-|x|))
    return jnp.minimum(x, 0.0) - jnp.log1p(jnp.exp(-jnp.abs(x)))


def _skipgram_kernel(i_idx_ref, j_idx_ref, neg_idx_ref, wi_ref, wj_ref,
                     out_ref, acc_ref,
                     *, tile_b, n_neg, num_embed, batch, tiles_per_core):
    c = pl.program_id(0)          # parallel axis (v7x TensorCores)
    t = pl.program_id(1)          # serial batch-tile axis

    @pl.when(t == 0)
    def _():
        acc_ref[...] = jnp.zeros_like(acc_ref)

    vocab_iota = jax.lax.broadcasted_iota(jnp.int32, (tile_b, num_embed), 1)

    # MXU one-hot "gather" of the center rows (exact row selection, no DMAs).
    oh_i = (i_idx_ref[...] == vocab_iota).astype(jnp.float32)         # (tb, V)
    w_i = jnp.dot(oh_i, wi_ref[...],
                  preferred_element_type=jnp.float32)                 # (tb, D)

    # Scores of every batch row against every wj row: one MXU matmul.
    s_all = jax.lax.dot_general(
        w_i, wj_ref[...], (((1,), (1,)), ((), ())),
        preferred_element_type=jnp.float32)                           # (tb, V)

    # Positive + K negative scores = one-hot masked lane reductions of s_all,
    # collected into one lane-dense (tile_b, K + 1) matrix.
    neg_idx = neg_idx_ref[...]                                        # (tb, K)
    cols = [jnp.sum(jnp.where(j_idx_ref[...] == vocab_iota, s_all, 0.0),
                    axis=1, keepdims=True)]
    for k in range(n_neg):                                            # static K
        oh_k = neg_idx[:, k:k + 1] == vocab_iota
        cols.append(jnp.sum(jnp.where(oh_k, s_all, 0.0),
                            axis=1, keepdims=True))
    scores = jnp.concatenate(cols, axis=1)                            # (tb, K+1)

    # clamp, flip sign of the negative columns, -logsigmoid, sum columns.
    scores = jnp.clip(scores, -10.0, 10.0)
    col_id = jax.lax.broadcasted_iota(jnp.int32, (tile_b, n_neg + 1), 1)
    signed = jnp.where(col_id == 0, scores, -scores)
    per_row = -jnp.sum(_log_sigmoid(signed), axis=1, keepdims=True)   # (tb, 1)

    # Mask padded rows of the (possibly ragged) last tile.
    base = (c * tiles_per_core + t) * tile_b
    row_ids = jax.lax.broadcasted_iota(jnp.int32, (tile_b, 1), 0) + base
    per_row = jnp.where(row_ids < batch, per_row, 0.0)

    acc_ref[...] += jnp.sum(per_row, axis=0, keepdims=True)

    # Flush this core's partial sum once, on its last batch tile.
    @pl.when(t == pl.num_programs(1) - 1)
    def _():
        out_ref[0] = acc_ref[...]


def _vmem_capacity_bytes():
    try:
        return int(pltpu.get_tpu_info().vmem_capacity_bytes)
    except Exception:
        return 64 * 1024 * 1024   # conservative fallback (safe for v7x)


def skipgram_forward(wi_table, wj_table, i_indices, j_indices, neg_indices,
                     *, tile_b=None, n_par=None):
    batch = int(i_indices.shape[0])
    n_neg = int(neg_indices.shape[1])
    num_embed, embed_dim = (int(d) for d in wi_table.shape)

    # Generation-gated VMEM budget: ~48 MiB on 64-MiB v7x, ~100 MiB on
    # 128-MiB v5e / v6e.
    usable = max(32 * 1024 * 1024,
                 min(_vmem_capacity_bytes() - 16 * 1024 * 1024,
                     100 * 1024 * 1024))

    # Both tables stay VMEM-resident (assume 2 pipeline buffers each).
    table_bytes = 2 * 2 * num_embed * embed_dim * 4
    # TODO(synk): fall back to a vocab-tiled streaming one-hot matmul when
    #             table_bytes does not fit the VMEM budget.

    if tile_b is None:
        # (tile_b, V) f32 temporaries (~6 live) + lane-padded index blocks.
        per_row = 6 * num_embed * 4 + 6 * 128 * 4
        avail = max(usable - table_bytes - 8 * 1024 * 1024, 2 * 1024 * 1024)
        tile_b = avail // per_row
    tile_b = int(min(tile_b, max(batch, 1)))
    tile_b = max(8, min(1024, (tile_b + 7) // 8 * 8))

    total_tiles = -(-batch // tile_b)
    if n_par is None:
        n_par = 2 if total_tiles >= 2 else 1     # use both TCs on v7x
    tiles_per_core = -(-total_tiles // n_par)
    padded_b = n_par * tiles_per_core * tile_b
    pad = padded_b - batch

    # Pad with index 0 (always valid); padded rows are masked in the kernel.
    i_p = jnp.pad(i_indices.astype(jnp.int32), (0, pad)).reshape(padded_b, 1)
    j_p = jnp.pad(j_indices.astype(jnp.int32), (0, pad)).reshape(padded_b, 1)
    neg_p = jnp.pad(neg_indices.astype(jnp.int32), ((0, pad), (0, 0)))

    kernel = functools.partial(
        _skipgram_kernel, tile_b=tile_b, n_neg=n_neg, num_embed=num_embed,
        batch=batch, tiles_per_core=tiles_per_core)

    idx_map = lambda c, t: (c * tiles_per_core + t, 0)
    tbl_map = lambda c, t: (0, 0)

    grid_spec = pltpu.PrefetchScalarGridSpec(
        num_scalar_prefetch=0,
        grid=(n_par, tiles_per_core),
        in_specs=[
            pl.BlockSpec((tile_b, 1), idx_map),              # i indices
            pl.BlockSpec((tile_b, 1), idx_map),              # j indices
            pl.BlockSpec((tile_b, n_neg), idx_map),          # negative indices
            pl.BlockSpec((num_embed, embed_dim), tbl_map),   # wi (VMEM resident)
            pl.BlockSpec((num_embed, embed_dim), tbl_map),   # wj (VMEM resident)
        ],
        out_specs=pl.BlockSpec((1, 1, 1), lambda c, t: (c, 0, 0)),
        scratch_shapes=[pltpu.VMEM((1, 1), jnp.float32)],    # per-core loss sum
    )

    partials = pl.pallas_call(
        kernel,
        out_shape=jax.ShapeDtypeStruct((n_par, 1, 1), jnp.float32),
        grid_spec=grid_spec,
        compiler_params=pltpu.CompilerParams(
            dimension_semantics=("parallel", "arbitrary"),
            vmem_limit_bytes=int(usable)),
    )(i_p, j_p, neg_p, wi_table, wj_table)

    return jnp.sum(partials) * (1.0 / batch)


def reference_forward(wi_table, wj_table, i_indices, j_indices, neg_indices):
    # Pure-JAX reference mirroring the PyTorch module exactly (f32 throughout).
    w_i = wi_table[i_indices]
    w_j = wj_table[j_indices]
    score = jnp.clip(jnp.sum(w_i * w_j, axis=1), -10.0, 10.0)
    score = -_log_sigmoid(score)
    emb_neg_v = wj_table[neg_indices]                              # (B, K, D)
    neg_score = jnp.clip(jnp.sum(emb_neg_v * w_i[:, None, :], axis=-1),
                         -10.0, 10.0)
    neg_score = -jnp.sum(_log_sigmoid(-neg_score), axis=1)
    return jnp.mean(score + neg_score)


if __name__ == "__main__":
    num_embed = 64
    embed_dim = 32
    batch = 10
    num_neg = 4

    key = jax.random.PRNGKey(0)
    k_wi, k_wj, k_i, k_j, k_neg = jax.random.split(key, 5)

    initrange = 1.0 / embed_dim
    wi_table = jax.random.uniform(
        k_wi, (num_embed, embed_dim), jnp.float32, -initrange, initrange)
    wj_table = jax.random.uniform(
        k_wj, (num_embed, embed_dim), jnp.float32, -initrange, initrange)

    i_indices = jax.random.randint(k_i, (batch,), 0, num_embed, jnp.int32)
    j_indices = jax.random.randint(k_j, (batch,), 0, num_embed, jnp.int32)
    neg_indices = jax.random.randint(
        k_neg, (batch, num_neg), 0, num_embed, jnp.int32)

    # tile_b=8 with batch=10 -> 2 batch tiles, a (2, 1) grid whose first axis
    # is "parallel" (both v7x TCs), and a ragged, masked last tile.
    loss = skipgram_forward(wi_table, wj_table, i_indices, j_indices,
                            neg_indices, tile_b=8)
    jax.block_until_ready(loss)

    ref = reference_forward(wi_table, wj_table, i_indices, j_indices,
                            neg_indices)
    jax.block_until_ready(ref)

    assert jnp.allclose(loss, ref, rtol=1e-3, atol=1e-4), (loss, ref)
    print("KERNEL_OK")
</pallas_src>

<mosaic_0001>
module attributes {stable_mosaic.version = 11 : i64} {
  func.func @_skipgram_kernel(%arg0: i32, %arg1: i32, %arg2: memref<8x1xi32, #tpu.memory_space<vmem>>, %arg3: memref<8x1xi32, #tpu.memory_space<vmem>>, %arg4: memref<8x4xi32, #tpu.memory_space<vmem>>, %arg5: memref<64x32xf32, #tpu.memory_space<vmem>>, %arg6: memref<64x32xf32, #tpu.memory_space<vmem>>, %arg7: memref<1x1x1xf32, #tpu.memory_space<vmem>>, %arg8: memref<1x1xf32, #tpu.memory_space<vmem>>) attributes {dimension_semantics = [#tpu.dimension_semantics<parallel>, #tpu.dimension_semantics<arbitrary>], iteration_bounds = array<i64: 2, 1>, scalar_prefetch = 0 : i64, scratch_operands = 1 : i64, tpu.core_type = #tpu.core_type<tc>, window_params = [{transform_indices = @transform_0, window_bounds = array<i64: 8, 1>}, {transform_indices = @transform_1, window_bounds = array<i64: 8, 1>}, {transform_indices = @transform_2, window_bounds = array<i64: 8, 4>}, {pipeline_mode = #tpu.pipeline_mode<synchronous>, transform_indices = @transform_3, window_bounds = array<i64: 64, 32>}, {pipeline_mode = #tpu.pipeline_mode<synchronous>, transform_indices = @transform_4, window_bounds = array<i64: 64, 32>}, {transform_indices = @transform_5, window_bounds = array<i64: 1, 1, 1>}]} {
    %c0_i32 = arith.constant 0 : i32
    %0 = arith.cmpi eq, %arg1, %c0_i32 : i32
    %1 = arith.extui %0 : i1 to i32
    %c0_i32_0 = arith.constant 0 : i32
    %2 = arith.cmpi ne, %1, %c0_i32_0 : i32
    scf.if %2 {
      %cst_37 = arith.constant 0.000000e+00 : f32
      %90 = vector.broadcast %cst_37 : f32 to vector<1x1xf32>
      %c0_38 = arith.constant 0 : index
      %c0_39 = arith.constant 0 : index
      %91 = vector.load %arg8[%c0_38, %c0_39] : memref<1x1xf32, #tpu.memory_space<vmem>>, vector<1x1xf32>
      tpu.vector_store %arg8[%c0_38, %c0_39], %90 {strides = array<i32>} : memref<1x1xf32, #tpu.memory_space<vmem>>, vector<1x1xf32>,
    } else {
    }
    %3 = tpu.iota {dimensions = array<i32: 1>} : vector<8x64xi32>
    %c0 = arith.constant 0 : index
    %c0_1 = arith.constant 0 : index
    %4 = vector.load %arg2[%c0, %c0_1] : memref<8x1xi32, #tpu.memory_space<vmem>>, vector<8x1xi32>
    %5 = vector.broadcast %4 : vector<8x1xi32> to vector<8x64xi32>
    %6 = arith.cmpi eq, %5, %3 : vector<8x64xi32>
    %7 = arith.extui %6 : vector<8x64xi1> to vector<8x64xi32>
    %8 = arith.sitofp %7 : vector<8x64xi32> to vector<8x64xf32>
    %c0_2 = arith.constant 0 : index
    %c0_3 = arith.constant 0 : index
    %9 = vector.load %arg5[%c0_2, %c0_3] : memref<64x32xf32, #tpu.memory_space<vmem>>, vector<64x32xf32>
    %cst = arith.constant dense<0.000000e+00> : vector<8x32xf32>
    %10 = tpu.matmul %8, %9, %cst {dimension_numbers = #tpu.dot_dimension_numbers<[1], [0], [0], [1], [0, 0, 1, 1], [], []>} : vector<8x64xf32>, vector<64x32xf32>, vector<8x32xf32> -> vector<8x32xf32>
    %c0_4 = arith.constant 0 : index
    %c0_5 = arith.constant 0 : index
    %11 = vector.load %arg6[%c0_4, %c0_5] : memref<64x32xf32, #tpu.memory_space<vmem>>, vector<64x32xf32>
    %cst_6 = arith.constant dense<0.000000e+00> : vector<8x64xf32>
    %12 = tpu.matmul %10, %11, %cst_6 {dimension_numbers = #tpu.dot_dimension_numbers<[1], [1], [0], [0], [0, 0, 1, 0], [], []>} : vector<8x32xf32>, vector<64x32xf32>, vector<8x64xf32> -> vector<8x64xf32>
    %c0_7 = arith.constant 0 : index
    %c0_8 = arith.constant 0 : index
    %13 = vector.load %arg4[%c0_7, %c0_8] : memref<8x4xi32, #tpu.memory_space<vmem>>, vector<8x4xi32>
    %c0_9 = arith.constant 0 : index
    %c0_10 = arith.constant 0 : index
    %14 = vector.load %arg3[%c0_9, %c0_10] : memref<8x1xi32, #tpu.memory_space<vmem>>, vector<8x1xi32>
    %15 = vector.broadcast %14 : vector<8x1xi32> to vector<8x64xi32>
    %16 = arith.cmpi eq, %15, %3 : vector<8x64xi32>
    %cst_11 = arith.constant 0.000000e+00 : f32
    %17 = vector.broadcast %cst_11 : f32 to vector<8x64xf32>
    %18 = arith.select %16, %12, %17 : vector<8x64xi1>, vector<8x64xf32>
    %cst_12 = arith.constant dense<0.000000e+00> : vector<8xf32>
    %19 = vector.multi_reduction <add>, %18, %cst_12 [1] : vector<8x64xf32> to vector<8xf32>
    %20 = vector.shape_cast %19 : vector<8xf32> to vector<8x1xf32>
    %21 = vector.extract_strided_slice %13 {offsets = [0, 0], sizes = [8, 1], strides = [1, 1]} : vector<8x4xi32> to vector<8x1xi32>
    %22 = vector.broadcast %21 : vector<8x1xi32> to vector<8x64xi32>
    %23 = arith.cmpi eq, %22, %3 : vector<8x64xi32>
    %cst_13 = arith.constant 0.000000e+00 : f32
    %24 = vector.broadcast %cst_13 : f32 to vector<8x64xf32>
    %25 = arith.select %23, %12, %24 : vector<8x64xi1>, vector<8x64xf32>
    %cst_14 = arith.constant dense<0.000000e+00> : vector<8xf32>
    %26 = vector.multi_reduction <add>, %25, %cst_14 [1] : vector<8x64xf32> to vector<8xf32>
    %27 = vector.shape_cast %26 : vector<8xf32> to vector<8x1xf32>
    %28 = vector.extract_strided_slice %13 {offsets = [0, 1], sizes = [8, 1], strides = [1, 1]} : vector<8x4xi32> to vector<8x1xi32>
    %29 = vector.broadcast %28 : vector<8x1xi32> to vector<8x64xi32>
    %30 = arith.cmpi eq, %29, %3 : vector<8x64xi32>
    %cst_15 = arith.constant 0.000000e+00 : f32
    %31 = vector.broadcast %cst_15 : f32 to vector<8x64xf32>
    %32 = arith.select %30, %12, %31 : vector<8x64xi1>, vector<8x64xf32>
    %cst_16 = arith.constant dense<0.000000e+00> : vector<8xf32>
    %33 = vector.multi_reduction <add>, %32, %cst_16 [1] : vector<8x64xf32> to vector<8xf32>
    %34 = vector.shape_cast %33 : vector<8xf32> to vector<8x1xf32>
    %35 = vector.extract_strided_slice %13 {offsets = [0, 2], sizes = [8, 1], strides = [1, 1]} : vector<8x4xi32> to vector<8x1xi32>
    %36 = vector.broadcast %35 : vector<8x1xi32> to vector<8x64xi32>
    %37 = arith.cmpi eq, %36, %3 : vector<8x64xi32>
    %cst_17 = arith.constant 0.000000e+00 : f32
    %38 = vector.broadcast %cst_17 : f32 to vector<8x64xf32>
    %39 = arith.select %37, %12, %38 : vector<8x64xi1>, vector<8x64xf32>
    %cst_18 = arith.constant dense<0.000000e+00> : vector<8xf32>
    %40 = vector.multi_reduction <add>, %39, %cst_18 [1] : vector<8x64xf32> to vector<8xf32>
    %41 = vector.shape_cast %40 : vector<8xf32> to vector<8x1xf32>
    %42 = vector.extract_strided_slice %13 {offsets = [0, 3], sizes = [8, 1], strides = [1, 1]} : vector<8x4xi32> to vector<8x1xi32>
    %43 = vector.broadcast %42 : vector<8x1xi32> to vector<8x64xi32>
    %44 = arith.cmpi eq, %43, %3 : vector<8x64xi32>
    %cst_19 = arith.constant 0.000000e+00 : f32
    %45 = vector.broadcast %cst_19 : f32 to vector<8x64xf32>
    %46 = arith.select %44, %12, %45 : vector<8x64xi1>, vector<8x64xf32>
    %cst_20 = arith.constant dense<0.000000e+00> : vector<8xf32>
    %47 = vector.multi_reduction <add>, %46, %cst_20 [1] : vector<8x64xf32> to vector<8xf32>
    %48 = vector.shape_cast %47 : vector<8xf32> to vector<8x1xf32>
    %49 = tpu.concatenate %20, %27, %34, %41, %48 in 1 : vector<8x1xf32>, vector<8x1xf32>, vector<8x1xf32>, vector<8x1xf32>, vector<8x1xf32> -> vector<8x5xf32>
    %cst_21 = arith.constant -1.000000e+01 : f32
    %cst_22 = arith.constant 1.000000e+01 : f32
    %50 = vector.broadcast %cst_21 : f32 to vector<8x5xf32>
    %51 = arith.maximumf %50, %49 : vector<8x5xf32>
    %52 = vector.broadcast %cst_22 : f32 to vector<8x5xf32>
    %53 = arith.minimumf %52, %51 : vector<8x5xf32>
    %54 = tpu.iota {dimensions = array<i32: 1>} : vector<8x5xi32>
    %c0_i32_23 = arith.constant 0 : i32
    %55 = vector.broadcast %c0_i32_23 : i32 to vector<8x5xi32>
    %56 = arith.cmpi eq, %54, %55 : vector<8x5xi32>
    %cst_24 = arith.constant 0.000000e+00 : f32
    %57 = vector.broadcast %cst_24 : f32 to vector<8x5xf32>
    %58 = arith.subf %57, %53 : vector<8x5xf32>
    %59 = arith.select %56, %53, %58 : vector<8x5xi1>, vector<8x5xf32>
    %cst_25 = arith.constant 0.000000e+00 : f32
    %60 = vector.broadcast %cst_25 : f32 to vector<8x5xf32>
    %61 = arith.minimumf %59, %60 : vector<8x5xf32>
    %62 = math.absf %59 : vector<8x5xf32>
    %cst_26 = arith.constant 0.000000e+00 : f32
    %63 = vector.broadcast %cst_26 : f32 to vector<8x5xf32>
    %64 = arith.subf %63, %62 : vector<8x5xf32>
    %65 = math.exp %64 : vector<8x5xf32>
    %66 = math.log1p %65 : vector<8x5xf32>
    %67 = arith.subf %61, %66 : vector<8x5xf32>
    %cst_27 = arith.constant dense<0.000000e+00> : vector<8xf32>
    %68 = vector.multi_reduction <add>, %67, %cst_27 [1] : vector<8x5xf32> to vector<8xf32>
    %69 = vector.shape_cast %68 : vector<8xf32> to vector<8x1xf32>
    %cst_28 = arith.constant 0.000000e+00 : f32
    %70 = vector.broadcast %cst_28 : f32 to vector<8x1xf32>
    %71 = arith.subf %70, %69 : vector<8x1xf32>
    %c1_i32 = arith.constant 1 : i32
    %72 = arith.muli %arg0, %c1_i32 : i32
    %73 = arith.addi %72, %arg1 : i32
    %c8_i32 = arith.constant 8 : i32
    %74 = arith.muli %73, %c8_i32 : i32
    %75 = tpu.iota {dimensions = array<i32: 0>} : vector<8x1xi32>
    %76 = vector.broadcast %74 : i32 to vector<8x1xi32>
    %77 = arith.addi %75, %76 : vector<8x1xi32>
    %c10_i32 = arith.constant 10 : i32
    %78 = vector.broadcast %c10_i32 : i32 to vector<8x1xi32>
    %79 = arith.cmpi slt, %77, %78 : vector<8x1xi32>
    %cst_29 = arith.constant 0.000000e+00 : f32
    %80 = vector.broadcast %cst_29 : f32 to vector<8x1xf32>
    %81 = arith.select %79, %71, %80 : vector<8x1xi1>, vector<8x1xf32>
    %c0_30 = arith.constant 0 : index
    %c0_31 = arith.constant 0 : index
    %82 = vector.load %arg8[%c0_30, %c0_31] : memref<1x1xf32, #tpu.memory_space<vmem>>, vector<1x1xf32>
    %cst_32 = arith.constant dense<0.000000e+00> : vector<1xf32>
    %83 = vector.multi_reduction <add>, %81, %cst_32 [0] : vector<8x1xf32> to vector<1xf32>
    %84 = vector.shape_cast %83 : vector<1xf32> to vector<1x1xf32>
    %85 = arith.addf %82, %84 : vector<1x1xf32>
    %c0_33 = arith.constant 0 : index
    %c0_34 = arith.constant 0 : index
    %86 = vector.load %arg8[%c0_33, %c0_34] : memref<1x1xf32, #tpu.memory_space<vmem>>, vector<1x1xf32>
    tpu.vector_store %arg8[%c0_33, %c0_34], %85 {strides = array<i32>} : memref<1x1xf32, #tpu.memory_space<vmem>>, vector<1x1xf32>,
    %c0_i32_35 = arith.constant 0 : i32
    %87 = arith.cmpi eq, %arg1, %c0_i32_35 : i32
    %88 = arith.extui %87 : i1 to i32
    %c0_i32_36 = arith.constant 0 : i32
    %89 = arith.cmpi ne, %88, %c0_i32_36 : i32
    scf.if %89 {
      %c0_37 = arith.constant 0 : index
      %c0_38 = arith.constant 0 : index
      %90 = vector.load %arg8[%c0_37, %c0_38] : memref<1x1xf32, #tpu.memory_space<vmem>>, vector<1x1xf32>
      %c0_39 = arith.constant 0 : index
      %c0_40 = arith.constant 0 : index
      %c0_41 = arith.constant 0 : index
      %91 = vector.load %arg7[%c0_39, %c0_40, %c0_41] : memref<1x1x1xf32, #tpu.memory_space<vmem>>, vector<1x1x1xf32>
      %92 = vector.shape_cast %91 : vector<1x1x1xf32> to vector<1x1xf32>
      %93 = vector.shape_cast %90 : vector<1x1xf32> to vector<1x1x1xf32>
      tpu.vector_store %arg7[%c0_39, %c0_40, %c0_41], %93 {strides = array<i32>} : memref<1x1x1xf32, #tpu.memory_space<vmem>>, vector<1x1x1xf32>,
    } else {
    }
    return
  }
  func.func @transform_0(%arg0: i32, %arg1: i32) -> (i32, i32) {
    %c1_i32 = arith.constant 1 : i32
    %0 = arith.muli %arg0, %c1_i32 : i32
    %1 = arith.addi %0, %arg1 : i32
    %c0_i32 = arith.constant 0 : i32
    %c0_i32_0 = arith.constant 0 : i32
    return %1, %c0_i32 : i32, i32
  }
  func.func @transform_1(%arg0: i32, %arg1: i32) -> (i32, i32) {
    %c1_i32 = arith.constant 1 : i32
    %0 = arith.muli %arg0, %c1_i32 : i32
    %1 = arith.addi %0, %arg1 : i32
    %c0_i32 = arith.constant 0 : i32
    %c0_i32_0 = arith.constant 0 : i32
    return %1, %c0_i32 : i32, i32
  }
  func.func @transform_2(%arg0: i32, %arg1: i32) -> (i32, i32) {
    %c1_i32 = arith.constant 1 : i32
    %0 = arith.muli %arg0, %c1_i32 : i32
    %1 = arith.addi %0, %arg1 : i32
    %c0_i32 = arith.constant 0 : i32
    %c0_i32_0 = arith.constant 0 : i32
    return %1, %c0_i32 : i32, i32
  }
  func.func @transform_3(%arg0: i32, %arg1: i32) -> (i32, i32) {
    %c0_i32 = arith.constant 0 : i32
    %c0_i32_0 = arith.constant 0 : i32
    %c0_i32_1 = arith.constant 0 : i32
    return %c0_i32, %c0_i32_0 : i32, i32
  }
  func.func @transform_4(%arg0: i32, %arg1: i32) -> (i32, i32) {
    %c0_i32 = arith.constant 0 : i32
    %c0_i32_0 = arith.constant 0 : i32
    %c0_i32_1 = arith.constant 0 : i32
    return %c0_i32, %c0_i32_0 : i32, i32
  }
  func.func @transform_5(%arg0: i32, %arg1: i32) -> (i32, i32, i32) {
    %c0_i32 = arith.constant 0 : i32
    %c0_i32_0 = arith.constant 0 : i32
    %c0_i32_1 = arith.constant 0 : i32
    return %arg0, %c0_i32, %c0_i32_0 : i32, i32, i32
  }
}

</mosaic_0001>

<llo_original>
// kernel: tpu_custom_call.1
$region0: #{tpu_custom_call.1}
  #allocation0 [shape = 'u32[]', space=smem, size = 0x4, offset = 0x4, fixed_abs, tag = 'smem constant byte address 0x4 - core index']
  #allocation1 [shape = 'u32[144,128]{1,0:T(1,128)}', space=vmem, size = 0x12000, scoped, tag = 'internal scratch']
  #allocation2 [shape = 'f32[1,1]{1,0:T(1,128)}', space=vmem, size = 0x200, scoped, tag = 'scratch operand']
  %s0 = inlined_call_operand.vmem [shape: s32[16,1], index: 0, kind: input, shape index: {}]
  %s1 = inlined_call_operand.vmem [shape: s32[16,1], index: 1, kind: input, shape index: {}]
  %s2 = inlined_call_operand.vmem [shape: s32[16,4], index: 2, kind: input, shape index: {}]
  %s3 = inlined_call_operand.vmem [shape: f32[64,32], index: 3, kind: input, shape index: {}]
  %s4 = inlined_call_operand.vmem [shape: f32[64,32], index: 4, kind: input, shape index: {}]
  %s5 = inlined_call_operand.vmem [shape: f32[2,1,1], index: 5, kind: output, shape index: {}]
  %s6 = sld [smem:[#allocation0]]
  $region61: #{tpu_custom_call.1} parent=0
    _
  %s8 = ssub.s32 1, %s6
  %s9 = scalar_select 0, %s8, %s6
  loop: start=0, step=1, limit=4
  $region2: #{tpu_custom_call.1} parent=0 // loop_pre_header
    _
  $region3: #{tpu_custom_call.1} parent=0 // loop_header
    %s11 = sphi 0, %s15
    %p12 = scmp.ge.s32.totalorder %s11, 4
    %s18 = sphi 0, %s30
    %s19 = sphi 0, %s26
    %s20 = sphi 0, %s18
    %s21 = sphi 0, %s19
    %s22 = sphi 0, %s20
    %s23 = sphi 0, %s21
    %s35 = sphi 0, %s37
    %s38 = sphi 0, %s35
    %s39 = sphi 0, %s38
    %s55 = sphi 0, %s39
    %s63 = sphi 0, %s65
    %s66 = sphi 0, %s63
    %s67 = sphi 0, %s66
    %s83 = sphi 0, %s67
    %s91 = sphi 0, %s93
    %s94 = sphi 0, %s91
    %s95 = sphi 0, %s94
    %s111 = sphi 0, %s95
    %s115 = sphi 0, %s115
    %s117 = sphi 0, %s115
    %s118 = sphi 0, %s117
    %s132 = sphi 0, %s118
    %s136 = sphi 0, %s136
    %s138 = sphi 0, %s136
    %s139 = sphi 0, %s138
    %s153 = sphi 0, %s139
    %s159 = sphi 0, %s161
    %s162 = sphi 0, %s159
    %s163 = sphi 0, %s162
    %s179 = sphi 0, %s163
  $region4: #{tpu_custom_call.1} parent=0 // loop_header_branch
    %14 = sbr.rel (%p12) target = $region8
  $region5: #{tpu_custom_call.1} parent=0 // loop_body
    %s16 = ssub.s32 %s11, 1
    %s17 = ssub.s32 %s11, 2
    %s24 = sadd.s32 1, %s19
    %p25 = scmp.ge.s32.totalorder %s24, 1
    %s26 = scalar_select %p25, 0, %s24
    %s27 = sadd.s32 1, %s18
    %s28 = scalar_select %p25, %s27, %s18
    %p29 = scmp.ge.s32.totalorder %s28, 2
    %s30 = scalar_select %p29, 0, %s28
    %s31 = sadd.s32 %s18, %s19
    %s32 = sadd.s32 %s30, %s26
    %s33 = ssub.s32 %s31, %s32
    %p34 = scmp.eq.s32.totalorder %s33, 0
    %s36 = sadd.s32 %s35, 1
    %s37 = scalar_select %p34, %s35, %s36
    %p40 = pneg %p34
    %p41 = scmp.eq.s32.totalorder %s11, 1
    %p42 = por %p40, %p41
    %p43 = scmp.ne.s32.totalorder %s35, %s38
    %p44 = scmp.eq.s32.totalorder %s11, 0
    %p45 = por %p43, %p44
    %p46 = scmp.ne.s32.totalorder %s35, %s38
    %p47 = scmp.eq.s32.totalorder %s16, 1
    %p48 = por %p46, %p47
    %p49 = scmp.ne.s32.totalorder %s38, %s39
    %p50 = scmp.eq.s32.totalorder %s16, 0
    %p51 = por %p49, %p50
    %p52 = scmp.ne.s32.totalorder %s38, %s39
    %p53 = scmp.eq.s32.totalorder %s17, 1
    %p54 = por %p52, %p53
    %p56 = scmp.ne.s32.totalorder %s39, %s55
    %p57 = scmp.eq.s32.totalorder %s17, 0
    %p58 = por %p56, %p57
    %s59 = sadd.s32 %s18, %s19
    %s60 = sadd.s32 %s30, %s26
    %s61 = ssub.s32 %s59, %s60
    %p62 = scmp.eq.s32.totalorder %s61, 0
    %s64 = sadd.s32 %s63, 1
    %s65 = scalar_select %p62, %s63, %s64
    %p68 = pneg %p62
    %p69 = scmp.eq.s32.totalorder %s11, 1
    %p70 = por %p68, %p69
    %p71 = scmp.ne.s32.totalorder %s63, %s66
    %p72 = scmp.eq.s32.totalorder %s11, 0
    %p73 = por %p71, %p72
    %p74 = scmp.ne.s32.totalorder %s63, %s66
    %p75 = scmp.eq.s32.totalorder %s16, 1
    %p76 = por %p74, %p75
    %p77 = scmp.ne.s32.totalorder %s66, %s67
    %p78 = scmp.eq.s32.totalorder %s16, 0
    %p79 = por %p77, %p78
    %p80 = scmp.ne.s32.totalorder %s66, %s67
    %p81 = scmp.eq.s32.totalorder %s17, 1
    %p82 = por %p80, %p81
    %p84 = scmp.ne.s32.totalorder %s67, %s83
    %p85 = scmp.eq.s32.totalorder %s17, 0
    %p86 = por %p84, %p85
    %s87 = sadd.s32 %s18, %s19
    %s88 = sadd.s32 %s30, %s26
    %s89 = ssub.s32 %s87, %s88
    %p90 = scmp.eq.s32.totalorder %s89, 0
    %s92 = sadd.s32 %s91, 1
    %s93 = scalar_select %p90, %s91, %s92
    %p96 = pneg %p90
    %p97 = scmp.eq.s32.totalorder %s11, 1
    %p98 = por %p96, %p97
    %p99 = scmp.ne.s32.totalorder %s91, %s94
    %p100 = scmp.eq.s32.totalorder %s11, 0
    %p101 = por %p99, %p100
    %p102 = scmp.ne.s32.totalorder %s91, %s94
    %p103 = scmp.eq.s32.totalorder %s16, 1
    %p104 = por %p102, %p103
    %p105 = scmp.ne.s32.totalorder %s94, %s95
    %p106 = scmp.eq.s32.totalorder %s16, 0
    %p107 = por %p105, %p106
    %p108 = scmp.ne.s32.totalorder %s94, %s95
    %p109 = scmp.eq.s32.totalorder %s17, 1
    %p110 = por %p108, %p109
    %p112 = scmp.ne.s32.totalorder %s95, %s111
    %p113 = scmp.eq.s32.totalorder %s17, 0
    %p114 = por %p112, %p113
    %s116 = sadd.s32 %s115, 1
    %p119 = scmp.eq.s32.totalorder %s11, 1
    %p120 = scmp.ne.s32.totalorder %s115, %s117
    %p121 = scmp.eq.s32.totalorder %s11, 0
    %p122 = por %p120, %p121
    %p123 = scmp.ne.s32.totalorder %s115, %s117
    %p124 = scmp.eq.s32.totalorder %s16, 1
    %p125 = por %p123, %p124
    %p126 = scmp.ne.s32.totalorder %s117, %s118
    %p127 = scmp.eq.s32.totalorder %s16, 0
    %p128 = por %p126, %p127
    %p129 = scmp.ne.s32.totalorder %s117, %s118
    %p130 = scmp.eq.s32.totalorder %s17, 1
    %p131 = por %p129, %p130
    %p133 = scmp.ne.s32.totalorder %s118, %s132
    %p134 = scmp.eq.s32.totalorder %s17, 0
    %p135 = por %p133, %p134
    %s137 = sadd.s32 %s136, 1
    %p140 = scmp.eq.s32.totalorder %s11, 1
    %p141 = scmp.ne.s32.totalorder %s136, %s138
    %p142 = scmp.eq.s32.totalorder %s11, 0
    %p143 = por %p141, %p142
    %p144 = scmp.ne.s32.totalorder %s136, %s138
    %p145 = scmp.eq.s32.totalorder %s16, 1
    %p146 = por %p144, %p145
    %p147 = scmp.ne.s32.totalorder %s138, %s139
    %p148 = scmp.eq.s32.totalorder %s16, 0
    %p149 = por %p147, %p148
    %p150 = scmp.ne.s32.totalorder %s138, %s139
    %p151 = scmp.eq.s32.totalorder %s17, 1
    %p152 = por %p150, %p151
    %p154 = scmp.ne.s32.totalorder %s139, %s153
    %p155 = scmp.eq.s32.totalorder %s17, 0
    %p156 = por %p154, %p155
    %s157 = ssub.s32 %s18, %s30
    %p158 = scmp.eq.s32.totalorder %s157, 0
    %s160 = sadd.s32 %s159, 1
    %s161 = scalar_select %p158, %s159, %s160
    %p164 = pneg %p158
    %p165 = scmp.eq.s32.totalorder %s11, 1
    %p166 = por %p164, %p165
    %p167 = scmp.ne.s32.totalorder %s159, %s162
    %p168 = scmp.eq.s32.totalorder %s11, 0
    %p169 = por %p167, %p168
    %p170 = scmp.ne.s32.totalorder %s159, %s162
    %p171 = scmp.eq.s32.totalorder %s16, 1
    %p172 = por %p170, %p171
    %p173 = scmp.ne.s32.totalorder %s162, %s163
    %p174 = scmp.eq.s32.totalorder %s16, 0
    %p175 = por %p173, %p174
    %p176 = scmp.ne.s32.totalorder %s162, %s163
    %p177 = scmp.eq.s32.totalorder %s17, 1
    %p178 = por %p176, %p177
    %p180 = scmp.ne.s32.totalorder %s163, %s179
    %p181 = scmp.eq.s32.totalorder %s17, 0
    %p182 = por %p180, %p181
    %p183 = scmp.le.s32.totalorder 1, %s11
    %p184 = scmp.lt.s32.totalorder %s11, 3
    %p185 = pnand %p183, %p184
    %p186 = pneg %p185
    // Predicated region
    $region9: #{tpu_custom_call.1} parent=5 // pred_check
      _
    $region10: #{tpu_custom_call.1} parent=5 // pred_check_branch
      %188 = sbr.rel (%p185) target = $region12
    $region11: #{tpu_custom_call.1} parent=5 // pred_region
      %s189 = ssub.s32 %s11, 1
      // Predicated region
      $region13: #{tpu_custom_call.1} parent=11 // pred_check
        %p190 = pneg %p128
      $region14: #{tpu_custom_call.1} parent=11 // pred_check_branch
        %192 = sbr.rel (%p190) target = $region16
      $region15: #{tpu_custom_call.1} parent=11 // pred_region
        _
      $region16: #{tpu_custom_call.1} parent=11 // pred_fallthru
        _
      // Predicated region
      $region17: #{tpu_custom_call.1} parent=11 // pred_check
        %p193 = pneg %p149
      $region18: #{tpu_custom_call.1} parent=11 // pred_check_branch
        %195 = sbr.rel (%p193) target = $region20
      $region19: #{tpu_custom_call.1} parent=11 // pred_region
        _
      $region20: #{tpu_custom_call.1} parent=11 // pred_fallthru
        _
    $region12: #{tpu_custom_call.1} parent=5 // pred_fallthru
      _
    %p196 = scmp.lt.s32.totalorder %s11, 2
    // Predicated region
    $region21: #{tpu_custom_call.1} parent=5 // pred_check
      %p197 = pneg %p196
    $region22: #{tpu_custom_call.1} parent=5 // pred_check_branch
      %199 = sbr.rel (%p197) target = $region24
    $region23: #{tpu_custom_call.1} parent=5 // pred_region
      // Predicated region
      $region25: #{tpu_custom_call.1} parent=23 // pred_check
        %p200 = pneg %p45
      $region26: #{tpu_custom_call.1} parent=23 // pred_check_branch
        %202 = sbr.rel (%p200) target = $region28
      $region27: #{tpu_custom_call.1} parent=23 // pred_region
        %s203 = sadd.s32 %s18, %s19
        %p204 = scmp.lt.s32.totalorder %s203, 1
        %s205 = scalar_select %p204, %s203, 1
        %s206 = smul.addr %s205, 8
        %s207 = scalar_lea.vmem %s0, %s206
        %s208 = sadd.s32 %s18, %s19
      $region28: #{tpu_custom_call.1} parent=23 // pred_fallthru
        _
      // Predicated region
      $region29: #{tpu_custom_call.1} parent=23 // pred_check
        %p209 = pneg %p73
      $region30: #{tpu_custom_call.1} parent=23 // pred_check_branch
        %211 = sbr.rel (%p209) target = $region32
      $region31: #{tpu_custom_call.1} parent=23 // pred_region
        %s212 = sadd.s32 %s18, %s19
        %p213 = scmp.lt.s32.totalorder %s212, 1
        %s214 = scalar_select %p213, %s212, 1
        %s215 = smul.addr %s214, 8
        %s216 = scalar_lea.vmem %s1, %s215
        %s217 = sadd.s32 %s18, %s19
      $region32: #{tpu_custom_call.1} parent=23 // pred_fallthru
        _
      // Predicated region
      $region33: #{tpu_custom_call.1} parent=23 // pred_check
        %p218 = pneg %p101
      $region34: #{tpu_custom_call.1} parent=23 // pred_check_branch
        %220 = sbr.rel (%p218) target = $region36
      $region35: #{tpu_custom_call.1} parent=23 // pred_region
        %s221 = sadd.s32 %s18, %s19
        %p222 = scmp.lt.s32.totalorder %s221, 1
        %s223 = scalar_select %p222, %s221, 1
        %s224 = smul.addr %s223, 8
        %s225 = scalar_lea.vmem %s2, %s224
        %s226 = sadd.s32 %s18, %s19
      $region36: #{tpu_custom_call.1} parent=23 // pred_fallthru
        _
    $region24: #{tpu_custom_call.1} parent=5 // pred_fallthru
      _
    %p227 = scmp.le.s32.totalorder 1, %s11
    %p228 = scmp.lt.s32.totalorder %s11, 3
    %p229 = pnand %p227, %p228
    %p230 = pneg %p229
    // Predicated region
    $region37: #{tpu_custom_call.1} parent=5 // pred_check
      _
    $region38: #{tpu_custom_call.1} parent=5 // pred_check_branch
      %232 = sbr.rel (%p229) target = $region40
    $region39: #{tpu_custom_call.1} parent=5 // pred_region
      %s233 = ssub.s32 %s11, 1
      %s234 = sadd.s32 %s20, %s21
      %p235 = scmp.lt.s32.totalorder %s234, 1
      %s236 = scalar_select %p235, %s234, 1
      %s237 = smul.addr %s236, 8
      %s238 = scalar_lea.vmem %s0, %s237
      %p239 = pneg %p51
      %p240 = pneg %p48
      %s241 = sadd.s32 %s20, %s21
      %p242 = scmp.lt.s32.totalorder %s241, 1
      %s243 = scalar_select %p242, %s241, 1
      %s244 = smul.addr %s243, 8
      %s245 = scalar_lea.vmem %s1, %s244
      %p246 = pneg %p79
      %p247 = pneg %p76
      %s248 = sadd.s32 %s20, %s21
      %p249 = scmp.lt.s32.totalorder %s248, 1
      %s250 = scalar_select %p249, %s248, 1
      %s251 = smul.addr %s250, 8
      %s252 = scalar_lea.vmem %s2, %s251
      %p253 = pneg %p107
      %p254 = pneg %p104
      %p255 = pneg %p128
      %p256 = pneg %p125
      %p257 = pneg %p149
      %p258 = pneg %p146
      %p259 = pneg %p175
      %p260 = pneg %p172
      %p261 = scmp.lt.s32.totalorder %s20, 1
      %s262 = scalar_select %p261, %s20, 1
      %s263 = scalar_lea.vmem %s5, %s262
      %s264 = sadd.s32 %s20, %s21
      %p265 = scmp.lt.s32.totalorder %s264, 1
      %s266 = scalar_select %p265, %s264, 1
      %s267 = smul.addr %s266, 8
      %s268 = scalar_lea.vmem %s0, %s267
      %s269 = sadd.s32 %s20, %s21
      %s270 = sadd.s32 %s20, %s21
      %p271 = scmp.lt.s32.totalorder %s270, 1
      %s272 = scalar_select %p271, %s270, 1
      %s273 = smul.addr %s272, 8
      %s274 = scalar_lea.vmem %s1, %s273
      %s275 = sadd.s32 %s20, %s21
      %s276 = sadd.s32 %s20, %s21
      %p277 = scmp.lt.s32.totalorder %s276, 1
      %s278 = scalar_select %p277, %s276, 1
      %s279 = smul.addr %s278, 8
      %s280 = scalar_lea.vmem %s2, %s279
      %s281 = sadd.s32 %s20, %s21
      %p282 = scmp.lt.s32.totalorder %s20, 1
      %s283 = scalar_select %p282, %s20, 1
      %s284 = scalar_lea.vmem %s5, %s283
      %p285 = scmp.eq.s32.totalorder %s21, 0
      // Predicated region
      $region41: #{tpu_custom_call.1} parent=39 // pred_check
        %p286 = pneg %p285
      $region42: #{tpu_custom_call.1} parent=39 // pred_check_branch
        %288 = sbr.rel (%p286) target = $region44
      $region43: #{tpu_custom_call.1} parent=39 // pred_region
        %vm289 = vcmask 0
        %290 = vst.msk [vmem:[#allocation2] sm:$0x1] %vm289, 0.0
      $region44: #{tpu_custom_call.1} parent=39 // pred_fallthru
        _
      %v291 = vlaneseq
      %v292 = vand.u32 %v291, 127
      %v293 = vld [vmem:[%s268] sm:$0xff]
      %294 = vset.pattern.permute.xlu0 0
      %295 = vperm.xlu0 %294, %v293
      %v296 = vpop.permute.xlu0 %295
      %vm297 = vcmp.eq.s32.totalorder %v296, %v292
      %v298 = vsel %vm297, 1, 0
      %v299 = vcvt.s32.f32 %v298
      %v300 = vld [vmem:[%s3] sm:$0xff]
      %v301 = vld [vmem:[%s3 + $0x8] sm:$0xff]
      %v302 = vld [vmem:[%s3 + $0x10] sm:$0xff]
      %v303 = vld [vmem:[%s3 + $0x18] sm:$0xff]
      %v304 = vld [vmem:[%s3 + $0x20] sm:$0xff]
      %v305 = vld [vmem:[%s3 + $0x28] sm:$0xff]
      %v306 = vld [vmem:[%s3 + $0x30] sm:$0xff]
      %v307 = vld [vmem:[%s3 + $0x38] sm:$0xff]
      %vm308 = vcmask 523264
      %v310 = vsel %vm308, %v299, 0
      %312 = vmatprep.subr.mxu0 0.0
      %313 = vmatpush1.msra.mxu0 %v300
      %314 = vmatprep.subr.mxu0 0.0
      %315 = vmatpush1.msra.mxu0 %v301
      %316 = vmatprep.subr.mxu0 0.0
      %317 = vmatpush1.msra.mxu0 %v302
      %318 = vmatprep.subr.mxu0 0.0
      %319 = vmatpush1.msra.mxu0 %v303
      %320 = vmatprep.subr.mxu0 0.0
      %321 = vmatpush1.msra.mxu0 %v304
      %322 = vmatprep.subr.mxu0 0.0
      %323 = vmatpush1.msra.mxu0 %v305
      %324 = vmatprep.subr.mxu0 0.0
      %325 = vmatpush1.msra.mxu0 %v306
      %326 = vmatprep.subr.mxu0 0.0
      %327 = vmatpush1.msra.mxu0 %v307
      %328 = vmatprep.subr.mxu0 0.0
      %329 = vmatpush1.msra.mxu0 0.0
      %330 = vmatprep.subr.mxu0 0.0
      %331 = vmatpush1.msra.mxu0 0.0
      %332 = vmatprep.subr.mxu0 0.0
      %333 = vmatpush1.msra.mxu0 0.0
      %334 = vmatprep.subr.mxu0 0.0
      %335 = vmatpush1.msra.mxu0 0.0
      %336 = vmatprep.subr.mxu0 0.0
      %337 = vmatpush1.msra.mxu0 0.0
      %338 = vmatprep.subr.mxu0 0.0
      %339 = vmatpush1.msra.mxu0 0.0
      %340 = vmatprep.subr.mxu0 0.0
      %341 = vmatpush1.msra.mxu0 0.0
      %342 = vmatprep.subr.mxu0 0.0
      %343 = vmatpush1.msra.mxu0 0.0
      %344 = vmatprep.subr.mxu0 0.0
      %345 = vmatpush1.msra.mxu0 0.0
      %346 = vmatprep.subr.mxu0 0.0
      %347 = vmatpush1.msra.mxu0 0.0
      %348 = vmatprep.subr.mxu0 0.0
      %349 = vmatpush1.msra.mxu0 0.0
      %350 = vmatprep.subr.mxu0 0.0
      %351 = vmatpush1.msra.mxu0 0.0
      %352 = vmatprep.subr.mxu0 0.0
      %353 = vmatpush1.msra.mxu0 0.0
      %354 = vmatprep.subr.mxu0 0.0
      %355 = vmatpush1.msra.mxu0 0.0
      %356 = vmatprep.subr.mxu0 0.0
      %357 = vmatpush1.msra.mxu0 0.0
      %358 = vmatprep.subr.mxu0 0.0
      %359 = vmatpush1.msra.mxu0 0.0
      %360 = vmatprep.subr.mxu0 0.0
      %361 = vmatpush1.msra.mxu0 0.0
      %362 = vmatprep.subr.mxu0 0.0
      %363 = vmatpush1.msra.mxu0 0.0
      %364 = vmatprep.subr.mxu0 0.0
      %365 = vmatpush1.msra.mxu0 0.0
      %366 = vmatprep.subr.mxu0 0.0
      %367 = vmatpush1.msra.mxu0 0.0
      %368 = vmatprep.subr.mxu0 0.0
      %369 = vmatpush1.msra.mxu0 0.0
      %370 = vmatprep.subr.mxu0 0.0
      %371 = vmatpush1.msra.mxu0 0.0
      %372 = vmatprep.subr.mxu0 0.0
      %373 = vmatpush1.msra.mxu0 0.0
      %374 = vmatprep.subr.mxu0 0.0
      %375 = vmatpush1.msra.mxu0 0.0
      %376 = vmatprep.mubr.f32.mxu0 0.0
      %377 = vmatmul.mubr.f32.gmra.mrb[0].mxu0 %v310
      %v378 = vpop.f32.mrb[0].mxu0
      %v379 = vadd.f32 0.0, %v378
      %v380 = vpop.f32.mrb[0].mxu0
      %381 = vdwg.mxu0
      %v382 = vld [vmem:[%s4] sm:$0xff]
      %v383 = vld [vmem:[%s4 + $0x8] sm:$0xff]
      %v384 = vld [vmem:[%s4 + $0x10] sm:$0xff]
      %v385 = vld [vmem:[%s4 + $0x18] sm:$0xff]
      %v386 = vld [vmem:[%s4 + $0x20] sm:$0xff]
      %v387 = vld [vmem:[%s4 + $0x28] sm:$0xff]
      %v388 = vld [vmem:[%s4 + $0x30] sm:$0xff]
      %v389 = vld [vmem:[%s4 + $0x38] sm:$0xff]
      %vm390 = vcmask 261120
      %v392 = vsel %vm390, %v379, 0
      %v395 = vsel %vm390, %v382, 0
      %v398 = vsel %vm390, %v383, 0
      %v401 = vsel %vm390, %v384, 0
      %v404 = vsel %vm390, %v385, 0
      %v407 = vsel %vm390, %v386, 0
      %v410 = vsel %vm390, %v387, 0
      %v413 = vsel %vm390, %v388, 0
      %v416 = vsel %vm390, %v389, 0
      %418 = vmatprep.subr.mxu0 0.0
      %419 = vmatpush1.xpose.msra.mxu0 %v395
      %420 = vmatprep.subr.mxu0 0.0
      %421 = vmatpush1.xpose.msra.mxu0 %v398
      %422 = vmatprep.subr.mxu0 0.0
      %423 = vmatpush1.xpose.msra.mxu0 %v401
      %424 = vmatprep.subr.mxu0 0.0
      %425 = vmatpush1.xpose.msra.mxu0 %v404
      %426 = vmatprep.subr.mxu0 0.0
      %427 = vmatpush1.xpose.msra.mxu0 %v407
      %428 = vmatprep.subr.mxu0 0.0
      %429 = vmatpush1.xpose.msra.mxu0 %v410
      %430 = vmatprep.subr.mxu0 0.0
      %431 = vmatpush1.xpose.msra.mxu0 %v413
      %432 = vmatprep.subr.mxu0 0.0
      %433 = vmatpush1.xpose.msra.mxu0 %v416
      %434 = vmatprep.subr.mxu0 0.0
      %435 = vmatpush1.xpose.msra.mxu0 0.0
      %436 = vmatprep.subr.mxu0 0.0
      %437 = vmatpush1.xpose.msra.mxu0 0.0
      %438 = vmatprep.subr.mxu0 0.0
      %439 = vmatpush1.xpose.msra.mxu0 0.0
      %440 = vmatprep.subr.mxu0 0.0
      %441 = vmatpush1.xpose.msra.mxu0 0.0
      %442 = vmatprep.subr.mxu0 0.0
      %443 = vmatpush1.xpose.msra.mxu0 0.0
      %444 = vmatprep.subr.mxu0 0.0
      %445 = vmatpush1.xpose.msra.mxu0 0.0
      %446 = vmatprep.subr.mxu0 0.0
      %447 = vmatpush1.xpose.msra.mxu0 0.0
      %448 = vmatprep.subr.mxu0 0.0
      %449 = vmatpush1.xpose.msra.mxu0 0.0
      %450 = vmatprep.subr.mxu0 0.0
      %451 = vmatpush1.xpose.msra.mxu0 0.0
      %452 = vmatprep.subr.mxu0 0.0
      %453 = vmatpush1.xpose.msra.mxu0 0.0
      %454 = vmatprep.subr.mxu0 0.0
      %455 = vmatpush1.xpose.msra.mxu0 0.0
      %456 = vmatprep.subr.mxu0 0.0
      %457 = vmatpush1.xpose.msra.mxu0 0.0
      %458 = vmatprep.subr.mxu0 0.0
      %459 = vmatpush1.xpose.msra.mxu0 0.0
      %460 = vmatprep.subr.mxu0 0.0
      %461 = vmatpush1.xpose.msra.mxu0 0.0
      %462 = vmatprep.subr.mxu0 0.0
      %463 = vmatpush1.xpose.msra.mxu0 0.0
      %464 = vmatprep.subr.mxu0 0.0
      %465 = vmatpush1.xpose.msra.mxu0 0.0
      %466 = vmatprep.subr.mxu0 0.0
      %467 = vmatpush1.xpose.msra.mxu0 0.0
      %468 = vmatprep.subr.mxu0 0.0
      %469 = vmatpush1.xpose.msra.mxu0 0.0
      %470 = vmatprep.subr.mxu0 0.0
      %471 = vmatpush1.xpose.msra.mxu0 0.0
      %472 = vmatprep.subr.mxu0 0.0
      %473 = vmatpush1.xpose.msra.mxu0 0.0
      %474 = vmatprep.subr.mxu0 0.0
      %475 = vmatpush1.xpose.msra.mxu0 0.0
      %476 = vmatprep.subr.mxu0 0.0
      %477 = vmatpush1.xpose.msra.mxu0 0.0
      %478 = vmatprep.subr.mxu0 0.0
      %479 = vmatpush1.xpose.msra.mxu0 0.0
      %480 = vmatprep.subr.mxu0 0.0
      %481 = vmatpush1.xpose.msra.mxu0 0.0
      %482 = vmatprep.mubr.f32.mxu0 0.0
      %483 = vmatmul.mubr.f32.gmra.mrb[0].mxu0 %v392
      %v484 = vpop.f32.mrb[0].mxu0
      %v485 = vadd.f32 0.0, %v484
      %v486 = vpop.f32.mrb[0].mxu0
      %487 = vdwg.mxu0
      %v488 = vld [vmem:[%s280] sm:$0xff]
      %v489 = vld [vmem:[%s274] sm:$0xff]
      %490 = vset.pattern.permute.xlu0 0
      %491 = vperm.xlu0 %490, %v489
      %v492 = vpop.permute.xlu0 %491
      %vm493 = vcmp.eq.s32.totalorder %v492, %v292
      %v494 = vsel %vm493, %v485, 0.0
      %v495 = vsel %vm308, %v494, 0.0
      %496 = vadd.xlane.f32.xlu0 %v495
      %v497 = vpop.xlane.xlu0 %496
      %498 = vset.pattern.permute.xlu0 0
      %499 = vperm.xlu0 %498, %v488
      %v500 = vpop.permute.xlu0 %499
      %vm501 = vcmp.eq.s32.totalorder %v500, %v292
      %v502 = vsel %vm501, %v485, 0.0
      %v503 = vsel %vm308, %v502, 0.0
      %504 = vadd.xlane.f32.xlu0 %v503
      %v505 = vpop.xlane.xlu0 %504
      %506 = vset.pattern.permute.xlu0 1
      %507 = vperm.xlu0 %506, %v488
      %v508 = vpop.permute.xlu0 %507
      %vm509 = vcmp.eq.s32.totalorder %v508, %v292
      %v510 = vsel %vm509, %v485, 0.0
      %v511 = vsel %vm308, %v510, 0.0
      %512 = vadd.xlane.f32.xlu0 %v511
      %v513 = vpop.xlane.xlu0 %512
      %514 = vset.pattern.permute.xlu0 2
      %515 = vperm.xlu0 %514, %v488
      %v516 = vpop.permute.xlu0 %515
      %vm517 = vcmp.eq.s32.totalorder %v516, %v292
      %v518 = vsel %vm517, %v485, 0.0
      %v519 = vsel %vm308, %v518, 0.0
      %520 = vadd.xlane.f32.xlu0 %v519
      %v521 = vpop.xlane.xlu0 %520
      %522 = vset.pattern.permute.xlu0 3
      %523 = vperm.xlu0 %522, %v488
      %v524 = vpop.permute.xlu0 %523
      %vm525 = vcmp.eq.s32.totalorder %v524, %v292
      %v526 = vsel %vm525, %v485, 0.0
      %v527 = vsel %vm308, %v526, 0.0
      %528 = vadd.xlane.f32.xlu0 %v527
      %v529 = vpop.xlane.xlu0 %528
      %vm530 = vcmask 7168
      %v531 = vsel %vm530, %v497, %v505
      %vm532 = vcmask 15360
      %v533 = vsel %vm532, %v531, %v513
      %vm534 = vcmask 23552
      %v535 = vsel %vm534, %v533, %v521
      %vm536 = vcmask 31744
      %v537 = vsel %vm536, %v535, %v529
      %v538 = vmax.f32 %v537, -10.0
      %v539 = vmin.f32 %v538, 10.0
      %vm540 = vcmp.eq.s32.totalorder %v292, 0
      %v541 = vsub.f32 0.0, %v539
      %v542 = vsel %vm540, %v539, %v541
      %v543 = vmin.f32 %v542, 0.0
      %v544 = vand.u32 2147483647, %v542
      %v545 = vsub.f32 0.0, %v544
      %v546 = vmul.f32 %v545, 1.442695
      %v547 = vpow.pop %v546
      %v548 = vadd.f32 %v547, 1.0
      %v549 = vlog2.pop %v548
      %v550 = vmul.f32 %v549, 0.6931472
      %v551 = vmul.f32 -0.5, %v547
      %v552 = vadd.f32 %v551, 1.0
      %v553 = vmul.f32 %v552, %v547
      %v554 = vand.u32 2147483647, %v547
      %vm555 = vcmp.lt.f32.partialorder %v554, 0.0004427343
      %v556 = vsel %vm555, %v553, %v550
      %v557 = vsub.f32 %v543, %v556
      %vm558 = vcmask 39936
      %v559 = vsel %vm558, %v557, 0.0
      %560 = vadd.xlane.f32.xlu0 %v559
      %v561 = vpop.xlane.xlu0 %560
      %v562 = vsub.f32 0.0, %v561
      %s563 = sadd.s32 %s20, %s21
      %s564 = smul.u32 %s563, 8
      %v565 = vlaneseq
      %v566 = vshrl.u32 %v565, 7
      %v567 = vstv %s564
      %v568 = vadd.s32 %v566, %v567
      %vm569 = vcmp.lt.s32.totalorder %v568, 10
      %v570 = vsel %vm569, %v562, 0.0
      %v571 = vld [vmem:[#allocation2] sm:$0x1]
      %v572 = vrot.slane %v570, 4
      %v573 = vadd.f32 %v570, %v572
      %v574 = vrot.slane %v573, 2
      %v575 = vadd.f32 %v573, %v574
      %v576 = vrot.slane %v575, 1
      %v577 = vadd.f32 %v575, %v576
      %v578 = vadd.f32 %v571, %v577
      %vm579 = vcmask 0
      %580 = vst.msk [vmem:[#allocation2] sm:$0x1] %vm579, %v578
      // Predicated region
      $region45: #{tpu_custom_call.1} parent=39 // pred_check
        %p581 = pneg %p285
      $region46: #{tpu_custom_call.1} parent=39 // pred_check_branch
        %583 = sbr.rel (%p581) target = $region48
      $region47: #{tpu_custom_call.1} parent=39 // pred_region
        %v584 = vld [vmem:[#allocation2] sm:$0x1]
        %585 = vst.msk [vmem:[%s284] sm:$0x1] %vm579, %v584
      $region48: #{tpu_custom_call.1} parent=39 // pred_fallthru
        _
      %p586 = scmp.lt.s32.totalorder %s20, 1
      %s587 = scalar_select %p586, %s20, 1
      %s588 = scalar_lea.vmem %s5, %s587
      // Predicated region
      $region49: #{tpu_custom_call.1} parent=39 // pred_check
        %p589 = pneg %p172
      $region50: #{tpu_custom_call.1} parent=39 // pred_check_branch
        %591 = sbr.rel (%p589) target = $region52
      $region51: #{tpu_custom_call.1} parent=39 // pred_region
        _
      $region52: #{tpu_custom_call.1} parent=39 // pred_fallthru
        _
    $region40: #{tpu_custom_call.1} parent=5 // pred_fallthru
      _
    %p592 = scmp.le.s32.totalorder 2, %s11
    // Predicated region
    $region53: #{tpu_custom_call.1} parent=5 // pred_check
      %p593 = pneg %p592
    $region54: #{tpu_custom_call.1} parent=5 // pred_check_branch
      %595 = sbr.rel (%p593) target = $region56
    $region55: #{tpu_custom_call.1} parent=5 // pred_region
      %s596 = ssub.s32 %s11, 2
      // Predicated region
      $region57: #{tpu_custom_call.1} parent=55 // pred_check
        %p597 = pneg %p178
      $region58: #{tpu_custom_call.1} parent=55 // pred_check_branch
        %599 = sbr.rel (%p597) target = $region60
      $region59: #{tpu_custom_call.1} parent=55 // pred_region
        %p600 = scmp.lt.s32.totalorder %s22, 1
        %s601 = scalar_select %p600, %s22, 1
        %s602 = scalar_lea.vmem %s5, %s601
      $region60: #{tpu_custom_call.1} parent=55 // pred_fallthru
        _
    $region56: #{tpu_custom_call.1} parent=5 // pred_fallthru
      _
  $region6: #{tpu_custom_call.1} parent=0 // loop_footer
    %s15 = sadd.s32 1, %s11
  $region7: #{tpu_custom_call.1} parent=0 // loop_footer_branch
    %10 = sbr.rel target = $region3
  $region8: #{tpu_custom_call.1} parent=0 // loop_exit
    _

</llo_original>
